<compile_context>
chip_gen: v7x
topology: tpu7x:2x2x1
jax: 0.10.0
libtpu: 0.0.40
codegen_flags: <defaults>
</compile_context>

<pallas_src>
import functools

import jax
import jax.numpy as jnp
from jax.experimental import pallas as pl
from jax.experimental.pallas import tpu as pltpu

_LANES = 512  # lane-dense slab width (multiple of 128)


def _round_up(x, m):
    return ((x + m - 1) // m) * m


def _bce_ignore_nan_kernel(yhat_ref, y_ref, out_ref, *, w0, w1, binary_labels,
                           rows_valid, tile_rows, need_row_mask):
    """One row-tile: masked/weighted BCE reduced to an (8, LANES) partial.

    Each grid step writes its own (1, 8, LANES) lane-dense partial sum, so steps
    are fully independent (no resident accumulator) and the grid axis is
    'parallel'. Rows >= rows_valid (the Pallas OOB tail of the last block) are
    masked in-kernel when the grid does not divide evenly.
    """
    lanes = y_ref.shape[-1]
    y_raw = y_ref[...].astype(jnp.float32)
    p = yhat_ref[...].astype(jnp.float32)

    nan_mask = jnp.isnan(y_raw)

    if binary_labels:
        # Labels are {0, 1, NaN}: one log per element, one compare reused for the
        # log argument and the weight; negation + NaN mask folded into the weight.
        is_one = y_raw == 1.0                     # NaN == 1.0 is False
        p_sel = jnp.where(is_one, p, 1.0 - p)
        if w0 == 1.0 and w1 == 1.0:
            neg_w = jnp.where(nan_mask, 0.0, -1.0)
        else:
            neg_w = jnp.where(nan_mask, 0.0,
                              jnp.where(is_one, jnp.float32(-w1), jnp.float32(-w0)))
        contrib = jnp.maximum(jnp.log(p_sel), -100.0) * neg_w
    else:
        # Exact BCELoss for arbitrary y in [0, 1] (PyTorch clamps log terms at -100).
        y = jnp.where(nan_mask, 0.0, y_raw)       # y[y != y] = 0
        log_p = jnp.maximum(jnp.log(p), -100.0)
        log_1mp = jnp.maximum(jnp.log(1.0 - p), -100.0)
        bce = -(y * log_p + (1.0 - y) * log_1mp)
        if w0 == 1.0 and w1 == 1.0:
            w = jnp.where(nan_mask, 0.0, 1.0)
        else:
            # weight = 1, overridden where y==0 / y==1 (disjoint sets); NaN-masked
            # positions get weight 0 so they contribute exactly nothing.
            w = jnp.where(y == 0.0, jnp.float32(w0), jnp.float32(1.0))
            w = jnp.where(y == 1.0, jnp.float32(w1), w)
            w = jnp.where(nan_mask, 0.0, w)
        contrib = bce * w

    if need_row_mask:
        # Last block overruns the array: its OOB rows read garbage (possibly NaN
        # after the log), so force them to zero with an explicit row-index test.
        base = pl.program_id(0) * tile_rows
        ridx = jax.lax.broadcasted_iota(jnp.int32, contrib.shape, 0) + base
        contrib = jnp.where(ridx < rows_valid, contrib, 0.0)

    # Sublane-group reduction (tile_rows, LANES) -> (8, LANES): pure VALU adds and
    # an unmasked full-vreg store. The final 8-row + cross-lane reduce happens once
    # in the wrapper on a tiny array.
    partial = jnp.sum(contrib.reshape(tile_rows // 8, 8, lanes), axis=0)
    out_ref[...] = partial.reshape(out_ref.shape)


def bce_ignore_nan(yhat, y, *, reduction="mean", class_weights=(1.0, 1.0),
                   tile_rows=1024, binary_labels=False):
    """Pallas-backed BCEIgnoreNaN forward. yhat, y: any-shape float arrays.

    Set binary_labels=True when labels are guaranteed to be in {0, 1, NaN}
    (toxsmi case) for a cheaper single-log path. On v6e/v7x, tile_rows=2048 is a
    good choice for large inputs; 1024 is safe on every generation.
    """
    if reduction not in ("mean", "sum"):
        raise ValueError(f"Chose reduction type as mean or sum, not {reduction}")
    if len(class_weights) != 2 or not all(w > 0 for w in class_weights):
        raise ValueError(f"Bad class weights: {class_weights}")
    if yhat.shape != y.shape:
        raise ValueError(f"Shape mismatch: {yhat.shape} vs {y.shape}")

    if not jnp.issubdtype(y.dtype, jnp.floating):
        y = y.astype(jnp.float32)
    if not jnp.issubdtype(yhat.dtype, jnp.floating):
        yhat = yhat.astype(jnp.float32)

    n_elems = y.size
    yf = y.reshape(-1)
    pf = yhat.reshape(-1)

    # Sublane alignment: 8 rows for 32-bit inputs, 16 for 16-bit (bf16/f16) so the
    # input BlockSpec respects the packed (16, 128) minimum tile.
    min_itemsize = min(jnp.dtype(yf.dtype).itemsize, jnp.dtype(pf.dtype).itemsize)
    row_align = max(8, 32 // int(min_itemsize))

    # Lane-dense repack: (n,) -> (rows_padded, LANES). Pad labels with NaN
    # (self-masking -> zero contribution) and predictions with 0.5 (finite logs).
    # Padding only goes to the sublane alignment (<= row_align*LANES - 1 elems);
    # the row tail of the last grid block is masked in-kernel instead.
    rows = pl.cdiv(n_elems, _LANES)
    rows_padded = _round_up(max(rows, row_align), row_align)
    pad = rows_padded * _LANES - n_elems
    if pad:
        yf = jnp.concatenate([yf, jnp.full((pad,), jnp.nan, yf.dtype)])
        pf = jnp.concatenate([pf, jnp.full((pad,), 0.5, pf.dtype)])
    y2 = yf.reshape(rows_padded, _LANES)
    p2 = pf.reshape(rows_padded, _LANES)

    tr = _round_up(max(int(tile_rows), row_align), row_align)
    tr = min(tr, rows_padded)                      # stays a multiple of row_align
    grid_n = pl.cdiv(rows_padded, tr)
    need_row_mask = (rows_padded % tr) != 0

    kernel = functools.partial(
        _bce_ignore_nan_kernel,
        w0=float(class_weights[0]),
        w1=float(class_weights[1]),
        binary_labels=bool(binary_labels),
        rows_valid=rows_padded,
        tile_rows=tr,
        need_row_mask=need_row_mask,
    )

    partials = pl.pallas_call(
        kernel,
        out_shape=jax.ShapeDtypeStruct((grid_n, 8, _LANES), jnp.float32),
        grid=(grid_n,),
        in_specs=[
            pl.BlockSpec((tr, _LANES), lambda i: (i, 0)),
            pl.BlockSpec((tr, _LANES), lambda i: (i, 0)),
        ],
        out_specs=pl.BlockSpec((1, 8, _LANES), lambda i: (i, 0, 0)),
        compiler_params=pltpu.CompilerParams(
            dimension_semantics=("parallel",),
            allow_input_fusion=[True, True],
        ),
    )(p2, y2)

    total = jnp.sum(partials)
    if reduction == "mean":
        # torch.mean averages over ALL elements (NaN-masked ones included).
        return total / jnp.float32(n_elems)
    return total


def _reference(yhat, y, reduction, class_weights):
    """Pure-JAX reference mirroring the PyTorch module (two-log BCE)."""
    yhat = yhat.astype(jnp.float32)
    y = y.astype(jnp.float32)
    nan_mask = jnp.isnan(y)
    valid = jnp.where(nan_mask, 0.0, 1.0)
    y0 = jnp.where(nan_mask, 0.0, y)
    log_p = jnp.maximum(jnp.log(yhat), -100.0)
    log_1mp = jnp.maximum(jnp.log(1.0 - yhat), -100.0)
    loss = -(y0 * log_p + (1.0 - y0) * log_1mp) * valid
    w = jnp.ones_like(y0)
    w = jnp.where(y0 == 0.0, class_weights[0], w)
    w = jnp.where(y0 == 1.0, class_weights[1], w)
    out = loss * w
    return jnp.mean(out) if reduction == "mean" else jnp.sum(out)


if __name__ == "__main__":
    key = jax.random.PRNGKey(0)

    def make_inputs(k, shape, dtype=jnp.float32):
        k1, k2, k3 = jax.random.split(k, 3)
        yhat = jax.nn.sigmoid(jax.random.normal(k1, shape, jnp.float32)).astype(dtype)
        y = jax.random.bernoulli(k2, 0.5, shape).astype(jnp.float32)
        y = jnp.where(jax.random.uniform(k3, shape) < 0.1, jnp.nan, y).astype(dtype)
        return yhat, y

    # (shape, tile_rows, dtype, class_weights):
    #   aligned 2D, ragged 2D, 1D, multi-block f32 with row-tail masking,
    #   bf16 multi-block with row-tail masking, unweighted specialization.
    cases = [
        ((16, 128), 1024, jnp.float32, (1.0, 2.0)),
        ((13, 57), 1024, jnp.float32, (1.0, 2.0)),
        ((200,), 1024, jnp.float32, (0.5, 3.0)),
        ((257, 129), 16, jnp.float32, (1.0, 2.0)),
        ((1030, 17), 32, jnp.bfloat16, (1.0, 2.0)),
        ((64, 33), 1024, jnp.float32, (1.0, 1.0)),
    ]
    keys = jax.random.split(key, len(cases))

    for (shape, tr, dtype, cw), k in zip(cases, keys):
        yhat, y = make_inputs(k, shape, dtype)
        for reduction in ("mean", "sum"):
            for binary in (False, True):
                out = bce_ignore_nan(yhat, y, reduction=reduction,
                                     class_weights=cw, tile_rows=tr,
                                     binary_labels=binary)
                out = jax.block_until_ready(out)
                ref = _reference(yhat, y, reduction, cw)
                assert jnp.allclose(out, ref, rtol=1e-5, atol=1e-5), (
                    shape, dtype, reduction, binary, out, ref)

    # TODO(synk): the PyTorch module's in-place side effect (mutating the caller's
    # `y` by zeroing NaNs) has no functional-JAX equivalent and is not reproduced.
    print("KERNEL_OK")
</pallas_src>

<mosaic_0001>
module attributes {stable_mosaic.version = 11 : i64} {
  func.func @_bce_ignore_nan_kernel(%arg0: i32, %arg1: memref<8x512xf32, #tpu.memory_space<vmem>>, %arg2: memref<8x512xf32, #tpu.memory_space<vmem>>, %arg3: memref<1x8x512xf32, #tpu.memory_space<vmem>>) attributes {dimension_semantics = [#tpu.dimension_semantics<parallel>], iteration_bounds = array<i64: 1>, scalar_prefetch = 0 : i64, scratch_operands = 0 : i64, tpu.core_type = #tpu.core_type<tc>, window_params = [{transform_indices = @transform_0, window_bounds = array<i64: 8, 512>}, {transform_indices = @transform_1, window_bounds = array<i64: 8, 512>}, {transform_indices = @transform_2, window_bounds = array<i64: 1, 8, 512>}]} {
    %c0 = arith.constant 0 : index
    %c0_0 = arith.constant 0 : index
    %0 = vector.load %arg2[%c0, %c0_0] : memref<8x512xf32, #tpu.memory_space<vmem>>, vector<8x512xf32>
    %c0_1 = arith.constant 0 : index
    %c0_2 = arith.constant 0 : index
    %1 = vector.load %arg1[%c0_1, %c0_2] : memref<8x512xf32, #tpu.memory_space<vmem>>, vector<8x512xf32>
    %2 = arith.cmpf one, %0, %0 : vector<8x512xf32>
    %cst = arith.constant 0.000000e+00 : f32
    %3 = vector.broadcast %cst : f32 to vector<8x512xf32>
    %4 = arith.select %2, %3, %0 : vector<8x512xi1>, vector<8x512xf32>
    %5 = math.log %1 : vector<8x512xf32>
    %cst_3 = arith.constant -1.000000e+02 : f32
    %6 = vector.broadcast %cst_3 : f32 to vector<8x512xf32>
    %7 = arith.maximumf %5, %6 : vector<8x512xf32>
    %cst_4 = arith.constant 1.000000e+00 : f32
    %8 = vector.broadcast %cst_4 : f32 to vector<8x512xf32>
    %9 = arith.subf %8, %1 : vector<8x512xf32>
    %10 = math.log %9 : vector<8x512xf32>
    %cst_5 = arith.constant -1.000000e+02 : f32
    %11 = vector.broadcast %cst_5 : f32 to vector<8x512xf32>
    %12 = arith.maximumf %10, %11 : vector<8x512xf32>
    %13 = arith.mulf %4, %7 : vector<8x512xf32>
    %cst_6 = arith.constant 1.000000e+00 : f32
    %14 = vector.broadcast %cst_6 : f32 to vector<8x512xf32>
    %15 = arith.subf %14, %4 : vector<8x512xf32>
    %16 = arith.mulf %15, %12 : vector<8x512xf32>
    %17 = arith.addf %13, %16 : vector<8x512xf32>
    %cst_7 = arith.constant 0.000000e+00 : f32
    %18 = vector.broadcast %cst_7 : f32 to vector<8x512xf32>
    %19 = arith.subf %18, %17 : vector<8x512xf32>
    %cst_8 = arith.constant 0.000000e+00 : f32
    %20 = vector.broadcast %cst_8 : f32 to vector<8x512xf32>
    %21 = arith.cmpf oeq, %4, %20 : vector<8x512xf32>
    %cst_9 = arith.constant 1.000000e+00 : f32
    %cst_10 = arith.constant 1.000000e+00 : f32
    %22 = vector.broadcast %cst_9 : f32 to vector<8x512xf32>
    %23 = vector.broadcast %cst_10 : f32 to vector<8x512xf32>
    %24 = arith.select %21, %22, %23 : vector<8x512xi1>, vector<8x512xf32>
    %cst_11 = arith.constant 1.000000e+00 : f32
    %25 = vector.broadcast %cst_11 : f32 to vector<8x512xf32>
    %26 = arith.cmpf oeq, %4, %25 : vector<8x512xf32>
    %cst_12 = arith.constant 2.000000e+00 : f32
    %27 = vector.broadcast %cst_12 : f32 to vector<8x512xf32>
    %28 = arith.select %26, %27, %24 : vector<8x512xi1>, vector<8x512xf32>
    %cst_13 = arith.constant 0.000000e+00 : f32
    %29 = vector.broadcast %cst_13 : f32 to vector<8x512xf32>
    %30 = arith.select %2, %29, %28 : vector<8x512xi1>, vector<8x512xf32>
    %31 = arith.mulf %19, %30 : vector<8x512xf32>
    %32 = vector.shape_cast %31 : vector<8x512xf32> to vector<1x8x512xf32>
    %cst_14 = arith.constant dense<0.000000e+00> : vector<8x512xf32>
    %33 = vector.multi_reduction <add>, %32, %cst_14 [0] : vector<1x8x512xf32> to vector<8x512xf32>
    %34 = vector.shape_cast %33 : vector<8x512xf32> to vector<1x8x512xf32>
    %c0_15 = arith.constant 0 : index
    %c0_16 = arith.constant 0 : index
    %c0_17 = arith.constant 0 : index
    %35 = vector.load %arg3[%c0_15, %c0_16, %c0_17] : memref<1x8x512xf32, #tpu.memory_space<vmem>>, vector<1x8x512xf32>
    tpu.vector_store %arg3[%c0_15, %c0_16, %c0_17], %34 {strides = array<i32>} : memref<1x8x512xf32, #tpu.memory_space<vmem>>, vector<1x8x512xf32>,
    return
  }
  func.func @transform_0(%arg0: i32) -> (i32, i32) {
    %c0_i32 = arith.constant 0 : i32
    %c0_i32_0 = arith.constant 0 : i32
    return %arg0, %c0_i32 : i32, i32
  }
  func.func @transform_1(%arg0: i32) -> (i32, i32) {
    %c0_i32 = arith.constant 0 : i32
    %c0_i32_0 = arith.constant 0 : i32
    return %arg0, %c0_i32 : i32, i32
  }
  func.func @transform_2(%arg0: i32) -> (i32, i32, i32) {
    %c0_i32 = arith.constant 0 : i32
    %c0_i32_0 = arith.constant 0 : i32
    %c0_i32_1 = arith.constant 0 : i32
    return %arg0, %c0_i32, %c0_i32_0 : i32, i32, i32
  }
}

</mosaic_0001>

<llo_original>
// kernel: tpu_custom_call.1
$region0: #{tpu_custom_call.1}
  #allocation0 [shape = 'u32[]', space=smem, size = 0x4, offset = 0x4, fixed_abs, tag = 'smem constant byte address 0x4 - core index']
  #allocation1 [shape = 'u32[144,128]{1,0:T(1,128)}', space=vmem, size = 0x12000, scoped, tag = 'internal scratch']
  %s0 = inlined_call_operand.hbm [shape: f32[8,512], index: 0, kind: input, shape index: {}]
  %s1 = inlined_call_operand.hbm [shape: f32[8,512], index: 1, kind: input, shape index: {}]
  %s2 = inlined_call_operand.hbm [shape: f32[1,8,512], index: 2, kind: output, shape index: {}]
  %s3 = sld [smem:[#allocation0]]
  $region26: #{tpu_custom_call.1} parent=0
    _
  %s5 = ssub.s32 1, %s3
  %s6 = scalar_select 0, %s5, %s3
  $region1: #{tpu_custom_call.1} parent=0
    #allocation2 [shape = 'u8[16384]{0}', space=vmem, size = 0x4000, scoped, tag = 'input window, operand 0, single buffered']
    #allocation3 [shape = 's32[1]{0}', space=sflag, size = 0x4, scoped, tag = 'scoped memory for tpu_custom_call.1']
    #allocation4 [shape = 's32[1]{0}', space=sflag, size = 0x4, scoped, tag = 'scoped memory for tpu_custom_call.1']
    #allocation5 [shape = 'u8[16384]{0}', space=vmem, size = 0x4000, scoped, tag = 'input window, operand 1, single buffered']
    #allocation6 [shape = 's32[1]{0}', space=sflag, size = 0x4, scoped, tag = 'scoped memory for tpu_custom_call.1']
    #allocation7 [shape = 'u8[16384]{0}', space=vmem, size = 0x4000, scoped, tag = 'output window, operand 0, single buffered']
    %7 = vsyncpa [#allocation3], 0
    %8 = vsyncpa [#allocation6], 0
    %9 = vsyncpa [#allocation4], 0
    // Predicated region
    $region2: #{tpu_custom_call.1} parent=1 // pred_check
      _
    $region3: #{tpu_custom_call.1} parent=1 // pred_check_branch
      %11 = sbr.rel (0) target = $region5
    $region4: #{tpu_custom_call.1} parent=1 // pred_region
      %s13 = ssub.s32 512, 512
      %14 = vsyncadd [#allocation3], %s13
      %s16 = sshll.u32 [#allocation2], 4
      %s17 = int_to_ptr.vmem [resolvable:$true] %s16
      %19 = dma.hbm_to_vmem [thread:$0]  %s0, 512, %s17, [#allocation3]
    $region5: #{tpu_custom_call.1} parent=1 // pred_fallthru
      _
    // Predicated region
    $region6: #{tpu_custom_call.1} parent=1 // pred_check
      _
    $region7: #{tpu_custom_call.1} parent=1 // pred_check_branch
      %21 = sbr.rel (0) target = $region9
    $region8: #{tpu_custom_call.1} parent=1 // pred_region
      %s23 = ssub.s32 512, 512
      %24 = vsyncadd [#allocation6], %s23
      %s26 = sshll.u32 [#allocation5], 4
      %s27 = int_to_ptr.vmem [resolvable:$true] %s26
      %29 = dma.hbm_to_vmem [thread:$0]  %s1, 512, %s27, [#allocation6]
    $region9: #{tpu_custom_call.1} parent=1 // pred_fallthru
      _
    // Predicated region
    $region10: #{tpu_custom_call.1} parent=1 // pred_check
      _
    $region11: #{tpu_custom_call.1} parent=1 // pred_check_branch
      %31 = sbr.rel (0) target = $region13
    $region12: #{tpu_custom_call.1} parent=1 // pred_region
      %32 = dma.done [#allocation3], 512
    $region13: #{tpu_custom_call.1} parent=1 // pred_fallthru
      _
    // Predicated region
    $region14: #{tpu_custom_call.1} parent=1 // pred_check
      _
    $region15: #{tpu_custom_call.1} parent=1 // pred_check_branch
      %34 = sbr.rel (0) target = $region17
    $region16: #{tpu_custom_call.1} parent=1 // pred_region
      %35 = dma.done [#allocation6], 512
    $region17: #{tpu_custom_call.1} parent=1 // pred_fallthru
      _
    %v36 = vld [vmem:[#allocation5] sm:$0xff]
    %v37 = vld [vmem:[#allocation5 + $0x8] sm:$0xff]
    %v38 = vld [vmem:[#allocation5 + $0x10] sm:$0xff]
    %v39 = vld [vmem:[#allocation5 + $0x18] sm:$0xff]
    %v40 = vld [vmem:[#allocation2] sm:$0xff]
    %v41 = vld [vmem:[#allocation2 + $0x8] sm:$0xff]
    %v42 = vld [vmem:[#allocation2 + $0x10] sm:$0xff]
    %v43 = vld [vmem:[#allocation2 + $0x18] sm:$0xff]
    %vm44 = vcmp.ne.f32.partialorder %v36, %v36
    %vm45 = vcmp.ne.f32.partialorder %v37, %v37
    %vm46 = vcmp.ne.f32.partialorder %v38, %v38
    %vm47 = vcmp.ne.f32.partialorder %v39, %v39
    %v48 = vsel %vm44, 0.0, %v36
    %v49 = vsel %vm45, 0.0, %v37
    %v50 = vsel %vm46, 0.0, %v38
    %v51 = vsel %vm47, 0.0, %v39
    %v52 = vlog2.pop %v40
    %v53 = vmul.f32 %v52, 0.6931472
    %v54 = vlog2.pop %v41
    %v55 = vmul.f32 %v54, 0.6931472
    %v56 = vlog2.pop %v42
    %v57 = vmul.f32 %v56, 0.6931472
    %v58 = vlog2.pop %v43
    %v59 = vmul.f32 %v58, 0.6931472
    %v60 = vmax.f32 %v53, -100.0
    %v61 = vmax.f32 %v55, -100.0
    %v62 = vmax.f32 %v57, -100.0
    %v63 = vmax.f32 %v59, -100.0
    %v64 = vsub.f32 1.0, %v40
    %v65 = vsub.f32 1.0, %v41
    %v66 = vsub.f32 1.0, %v42
    %v67 = vsub.f32 1.0, %v43
    %v68 = vlog2.pop %v64
    %v69 = vmul.f32 %v68, 0.6931472
    %v70 = vlog2.pop %v65
    %v71 = vmul.f32 %v70, 0.6931472
    %v72 = vlog2.pop %v66
    %v73 = vmul.f32 %v72, 0.6931472
    %v74 = vlog2.pop %v67
    %v75 = vmul.f32 %v74, 0.6931472
    %v76 = vmax.f32 %v69, -100.0
    %v77 = vmax.f32 %v71, -100.0
    %v78 = vmax.f32 %v73, -100.0
    %v79 = vmax.f32 %v75, -100.0
    %v80 = vmul.f32 %v48, %v60
    %v81 = vmul.f32 %v49, %v61
    %v82 = vmul.f32 %v50, %v62
    %v83 = vmul.f32 %v51, %v63
    %v84 = vsub.f32 1.0, %v48
    %v85 = vsub.f32 1.0, %v49
    %v86 = vsub.f32 1.0, %v50
    %v87 = vsub.f32 1.0, %v51
    %v88 = vmul.f32 %v84, %v76
    %v89 = vmul.f32 %v85, %v77
    %v90 = vmul.f32 %v86, %v78
    %v91 = vmul.f32 %v87, %v79
    %v92 = vadd.f32 %v80, %v88
    %v93 = vadd.f32 %v81, %v89
    %v94 = vadd.f32 %v82, %v90
    %v95 = vadd.f32 %v83, %v91
    %v96 = vsub.f32 0.0, %v92
    %v97 = vsub.f32 0.0, %v93
    %v98 = vsub.f32 0.0, %v94
    %v99 = vsub.f32 0.0, %v95
    %vm100 = vcmp.eq.f32.partialorder %v48, 1.0
    %vm101 = vcmp.eq.f32.partialorder %v49, 1.0
    %vm102 = vcmp.eq.f32.partialorder %v50, 1.0
    %vm103 = vcmp.eq.f32.partialorder %v51, 1.0
    %v104 = vsel %vm100, 2.0, 1.0
    %v105 = vsel %vm101, 2.0, 1.0
    %v106 = vsel %vm102, 2.0, 1.0
    %v107 = vsel %vm103, 2.0, 1.0
    %v108 = vsel %vm44, 0.0, %v104
    %v109 = vsel %vm45, 0.0, %v105
    %v110 = vsel %vm46, 0.0, %v106
    %v111 = vsel %vm47, 0.0, %v107
    %v112 = vmul.f32 %v96, %v108
    %v113 = vmul.f32 %v97, %v109
    %v114 = vmul.f32 %v98, %v110
    %v115 = vmul.f32 %v99, %v111
    %v116 = vadd.f32 %v112, 0.0
    %v117 = vadd.f32 %v113, 0.0
    %v118 = vadd.f32 %v114, 0.0
    %v119 = vadd.f32 %v115, 0.0
    %120 = vst [vmem:[#allocation7] sm:$0xff] %v116
    %121 = vst [vmem:[#allocation7 + $0x8] sm:$0xff] %v117
    %122 = vst [vmem:[#allocation7 + $0x10] sm:$0xff] %v118
    %123 = vst [vmem:[#allocation7 + $0x18] sm:$0xff] %v119
    // Predicated region
    $region18: #{tpu_custom_call.1} parent=1 // pred_check
      _
    $region19: #{tpu_custom_call.1} parent=1 // pred_check_branch
      %125 = sbr.rel (0) target = $region21
    $region20: #{tpu_custom_call.1} parent=1 // pred_region
      %s127 = ssub.s32 512, 512
      %128 = vsyncadd [#allocation4], %s127
      %s130 = sshll.u32 [#allocation7], 4
      %s131 = int_to_ptr.vmem [resolvable:$true] %s130
      %133 = dma.vmem_to_hbm [thread:$0]  %s131, 512, %s2, [#allocation4]
    $region21: #{tpu_custom_call.1} parent=1 // pred_fallthru
      _
    // Predicated region
    $region22: #{tpu_custom_call.1} parent=1 // pred_check
      _
    $region23: #{tpu_custom_call.1} parent=1 // pred_check_branch
      %135 = sbr.rel (0) target = $region25
    $region24: #{tpu_custom_call.1} parent=1 // pred_region
      %136 = dma.done [#allocation4], 512
    $region25: #{tpu_custom_call.1} parent=1 // pred_fallthru
      _
    %137 = vsyncpa [#allocation3], 1
    %138 = vsyncpa [#allocation6], 1
    %139 = vsyncpa [#allocation4], 1

</llo_original>
